<compile_context>
chip_gen: v5e
topology: v5e:2x2
jax: 0.10.0
libtpu: 0.0.40
codegen_flags: <defaults>
</compile_context>

<pallas_src>
import functools

import jax
import jax.numpy as jnp
from jax.experimental import pallas as pl
from jax.experimental.pallas import tpu as pltpu


def _double_conv_kernel(x3_ref, a1_ref, b1_ref, a2_ref, b2_ref, o_ref, *, img_rows):
    # x3_ref : (M, 3*W*Cin) bf16   ky-folded, row-shift-prepared input rows
    # a1_ref : (3*W*Cin, N) bf16   banded conv1 weights (ky stacked along K)
    # b1_ref : (1, N) f32
    # a2_ref : (3*N, N) bf16       banded conv2 weights (ky stacked along K)
    # b2_ref : (1, N) f32
    # o_ref  : (M, N)              lane-dense output rows (M = images_per_step * H)
    M, N = o_ref.shape

    # ---- conv1: single MXU matmul (ky taps pre-folded into K host-side) ----
    acc1 = jnp.dot(x3_ref[...], a1_ref[...], preferred_element_type=jnp.float32)
    relu = jnp.maximum(acc1 + b1_ref[...], 0.0)                       # (M, N) f32

    # ---- conv2: +/-1 row-shifted copies of the ReLU intermediate, built in
    # registers with zero border rows, lane-concatenated at offsets 0/N/2N,
    # then ONE (M, 3N) @ (3N, N) matmul.  No VMEM scratch round-trip. ----
    zero_row = jnp.zeros((1, N), jnp.float32)
    down = jnp.concatenate([zero_row, relu[:M - 1, :]], axis=0)       # row r <- relu[r-1]
    up = jnp.concatenate([relu[1:, :], zero_row], axis=0)             # row r <- relu[r+1]
    if M > img_rows:
        # Several images are stacked along M: also zero the interior image
        # borders so vertical taps never leak across images.
        r = jax.lax.broadcasted_iota(jnp.int32, (M, N), 0) % img_rows
        down = jnp.where(r == 0, 0.0, down)
        up = jnp.where(r == img_rows - 1, 0.0, up)
    lhs2 = jnp.concatenate([down, relu, up], axis=1).astype(jnp.bfloat16)  # (M, 3N)

    acc2 = jnp.dot(lhs2, a2_ref[...], preferred_element_type=jnp.float32)
    o_ref[...] = (acc2 + b2_ref[...]).astype(o_ref.dtype)


def _band_weights(w_hwio, width):
    """(3,3,Cin,Cout) HWIO weights -> (3, W*Cin, W*Cout) banded matrices.

    band[ky][u*Cin + c, j*Cout + o] = w[ky, u-j+1, c, o] if |u-j| <= 1 else 0,
    folding the kx taps and the left/right zero padding into the matmul.
    """
    kh, kw, cin, cout = w_hwio.shape
    u = jnp.arange(width)[:, None]        # input column
    j = jnp.arange(width)[None, :]        # output column
    dx = u - j + 1
    valid = (dx >= 0) & (dx < kw)
    dx_c = jnp.clip(dx, 0, kw - 1)
    band = w_hwio[:, dx_c]                                   # (3, W, W, Cin, Cout)
    band = jnp.where(valid[None, :, :, None, None], band, 0.0)
    return band.transpose(0, 1, 3, 2, 4).reshape(kh, width * cin, width * cout)


def prepare_double_conv_params(w1_oihw, b1, w2_oihw, b2, width):
    """One-time weight relayout (kept out of the per-call path for static weights)."""
    cout = w1_oihw.shape[0]
    n = width * cout
    w1_hwio = jnp.transpose(w1_oihw, (2, 3, 1, 0))           # (3,3,Cin,Cout)
    w2_hwio = jnp.transpose(w2_oihw, (2, 3, 1, 0))           # (3,3,Cout,Cout)
    a1_big = _band_weights(w1_hwio, width).reshape(-1, n).astype(jnp.bfloat16)   # (3*W*Cin,  N)
    a2_big = _band_weights(w2_hwio, width).reshape(-1, n).astype(jnp.bfloat16)   # (3*W*Cout, N)
    b1_row = jnp.tile(b1, width).reshape(1, n).astype(jnp.float32)               # bias at j*Cout+o
    b2_row = jnp.tile(b2, width).reshape(1, n).astype(jnp.float32)
    return a1_big, b1_row, a2_big, b2_row


def _images_per_step(batch):
    # v7x has 2 TensorCores/chip: keep 1 image per grid step so the "parallel"
    # batch axis spreads across cores.  Single-TC v5e/v6e: fold the whole batch
    # into one step (fewer pipeline steps, taller MXU M dimension).
    try:
        kind = jax.devices()[0].device_kind.lower()
        two_tc = ("v7" in kind) or ("7x" in kind)
    except Exception:
        two_tc = False
    return 1 if (two_tc and batch > 1) else batch


@jax.jit
def double_conv_pallas(x_nchw, params):
    """x_nchw: (B, Cin, H, W); params from prepare_double_conv_params; returns (B, Cout, H, W)."""
    a1_big, b1_row, a2_big, b2_row = params
    B, Cin, H, W = x_nchw.shape
    N = b1_row.shape[1]                 # W * Cout (multiple of 128 -> unmasked stores)
    Cout = N // W
    K1 = a1_big.shape[0]                # 3 * W * Cin

    # Lane layout + ky fold of the input (rows on sublanes, lanes = W*C), bf16
    # MXU operands.  TODO(synk): if the surrounding model keeps this NHWC/lane
    # layout end-to-end, these transpose/pad/concat HBM passes disappear.
    x_flat = jnp.transpose(x_nchw, (0, 2, 3, 1)).reshape(B, H, W * Cin)
    x_pad = jnp.pad(x_flat, ((0, 0), (1, 1), (0, 0)))                    # row padding only
    x3 = jnp.concatenate(
        [x_pad[:, 0:H], x_pad[:, 1:H + 1], x_pad[:, 2:H + 2]], axis=-1)  # (B, H, 3*W*Cin)
    x3 = x3.reshape(B * H, K1).astype(jnp.bfloat16)

    bm = _images_per_step(B)            # images per grid step (1 on v7x, B on v5e/v6e)
    rows = bm * H

    out2d = pl.pallas_call(
        functools.partial(_double_conv_kernel, img_rows=H),
        out_shape=jax.ShapeDtypeStruct((B * H, N), x_nchw.dtype),
        grid_spec=pltpu.PrefetchScalarGridSpec(
            num_scalar_prefetch=0,
            grid=(B // bm,),
            in_specs=[
                pl.BlockSpec((rows, K1), lambda i: (i, 0)),
                pl.BlockSpec((K1, N), lambda i: (0, 0)),
                pl.BlockSpec((1, N), lambda i: (0, 0)),
                pl.BlockSpec((3 * N, N), lambda i: (0, 0)),
                pl.BlockSpec((1, N), lambda i: (0, 0)),
            ],
            out_specs=pl.BlockSpec((rows, N), lambda i: (i, 0)),
        ),
        compiler_params=pltpu.CompilerParams(
            dimension_semantics=("parallel",),
            vmem_limit_bytes=32 * 1024 * 1024),
    )(x3, a1_big, b1_row, a2_big, b2_row)

    return out2d.reshape(B, H, W, Cout).transpose(0, 3, 1, 2)


def _reference(x_nchw, w1, b1, w2, b2):
    dn = ("NCHW", "OIHW", "NCHW")
    hp = jax.lax.Precision.HIGHEST
    y = jax.lax.conv_general_dilated(x_nchw, w1, (1, 1), "SAME",
                                     dimension_numbers=dn, precision=hp)
    y = y + b1[None, :, None, None]
    y = jnp.maximum(y, 0.0)
    y = jax.lax.conv_general_dilated(y, w2, (1, 1), "SAME",
                                     dimension_numbers=dn, precision=hp)
    y = y + b2[None, :, None, None]
    return y


if __name__ == "__main__":
    B, Cin, Cout, H, W = 2, 4, 8, 16, 16

    key = jax.random.PRNGKey(0)
    k_x, k_w1, k_b1, k_w2, k_b2 = jax.random.split(key, 5)

    x = jax.random.normal(k_x, (B, Cin, H, W), jnp.float32)
    # Deterministic synthetic params matching nn.Conv2d(in, out, 3) shapes (OIHW).
    w1 = jax.random.normal(k_w1, (Cout, Cin, 3, 3), jnp.float32) * 0.1
    b1 = jax.random.normal(k_b1, (Cout,), jnp.float32) * 0.1
    w2 = jax.random.normal(k_w2, (Cout, Cout, 3, 3), jnp.float32) * 0.1
    b2 = jax.random.normal(k_b2, (Cout,), jnp.float32) * 0.1

    params = prepare_double_conv_params(w1, b1, w2, b2, W)   # one-time weight relayout
    out = double_conv_pallas(x, params)
    out = jax.block_until_ready(out)

    ref = _reference(x, w1, b1, w2, b2)
    assert out.shape == (B, Cout, H, W)
    # bf16 MXU operands with f32 accumulation vs. an f32 (HIGHEST-precision)
    # reference: expected max abs error is a few e-3 at these value scales, so
    # use bf16-appropriate tolerances.
    assert jnp.allclose(out, ref, atol=2e-2, rtol=1e-2), "mismatch vs reference"

    print("KERNEL_OK")
</pallas_src>

<mosaic_0001>
module attributes {stable_mosaic.version = 11 : i64} {
  func.func @_double_conv_kernel(%arg0: i32, %arg1: memref<32x192xbf16, #tpu.memory_space<vmem>>, %arg2: memref<192x128xbf16, #tpu.memory_space<vmem>>, %arg3: memref<1x128xf32, #tpu.memory_space<vmem>>, %arg4: memref<384x128xbf16, #tpu.memory_space<vmem>>, %arg5: memref<1x128xf32, #tpu.memory_space<vmem>>, %arg6: memref<32x128xf32, #tpu.memory_space<vmem>>) attributes {dimension_semantics = [#tpu.dimension_semantics<parallel>], iteration_bounds = array<i64: 1>, scalar_prefetch = 0 : i64, scratch_operands = 0 : i64, tpu.core_type = #tpu.core_type<tc>, window_params = [{transform_indices = @transform_0, window_bounds = array<i64: 32, 192>}, {pipeline_mode = #tpu.pipeline_mode<synchronous>, transform_indices = @transform_1, window_bounds = array<i64: 192, 128>}, {pipeline_mode = #tpu.pipeline_mode<synchronous>, transform_indices = @transform_2, window_bounds = array<i64: 1, 128>}, {pipeline_mode = #tpu.pipeline_mode<synchronous>, transform_indices = @transform_3, window_bounds = array<i64: 384, 128>}, {pipeline_mode = #tpu.pipeline_mode<synchronous>, transform_indices = @transform_4, window_bounds = array<i64: 1, 128>}, {transform_indices = @transform_5, window_bounds = array<i64: 32, 128>}]} {
    %c0 = arith.constant 0 : index
    %c0_0 = arith.constant 0 : index
    %0 = vector.load %arg1[%c0, %c0_0] : memref<32x192xbf16, #tpu.memory_space<vmem>>, vector<32x192xbf16>
    %c0_1 = arith.constant 0 : index
    %c0_2 = arith.constant 0 : index
    %1 = vector.load %arg2[%c0_1, %c0_2] : memref<192x128xbf16, #tpu.memory_space<vmem>>, vector<192x128xbf16>
    %cst = arith.constant dense<0.000000e+00> : vector<32x128xf32>
    %2 = tpu.matmul %0, %1, %cst {dimension_numbers = #tpu.dot_dimension_numbers<[1], [0], [0], [1], [0, 0, 1, 1], [], []>} : vector<32x192xbf16>, vector<192x128xbf16>, vector<32x128xf32> -> vector<32x128xf32>
    %c0_3 = arith.constant 0 : index
    %c0_4 = arith.constant 0 : index
    %3 = vector.load %arg3[%c0_3, %c0_4] : memref<1x128xf32, #tpu.memory_space<vmem>>, vector<1x128xf32>
    %4 = vector.broadcast %3 : vector<1x128xf32> to vector<32x128xf32>
    %5 = arith.addf %2, %4 : vector<32x128xf32>
    %cst_5 = arith.constant 0.000000e+00 : f32
    %6 = vector.broadcast %cst_5 : f32 to vector<32x128xf32>
    %7 = arith.maximumf %5, %6 : vector<32x128xf32>
    %cst_6 = arith.constant 0.000000e+00 : f32
    %8 = vector.broadcast %cst_6 : f32 to vector<1x128xf32>
    %9 = vector.extract_strided_slice %7 {offsets = [0, 0], sizes = [31, 128], strides = [1, 1]} : vector<32x128xf32> to vector<31x128xf32>
    %10 = tpu.concatenate %8, %9 in 0 : vector<1x128xf32>, vector<31x128xf32> -> vector<32x128xf32>
    %11 = vector.extract_strided_slice %7 {offsets = [1, 0], sizes = [31, 128], strides = [1, 1]} : vector<32x128xf32> to vector<31x128xf32>
    %12 = tpu.concatenate %11, %8 in 0 : vector<31x128xf32>, vector<1x128xf32> -> vector<32x128xf32>
    %13 = tpu.iota {dimensions = array<i32: 0>} : vector<32x128xi32>
    %c16_i32 = arith.constant 16 : i32
    %c0_i32 = arith.constant 0 : i32
    %14 = arith.cmpi eq, %c16_i32, %c0_i32 : i32
    %c1_i32 = arith.constant 1 : i32
    %15 = arith.select %14, %c1_i32, %c16_i32 : i32
    %16 = vector.broadcast %15 : i32 to vector<32x128xi32>
    %17 = arith.remsi %13, %16 : vector<32x128xi32>
    %c0_i32_7 = arith.constant 0 : i32
    %18 = vector.broadcast %c0_i32_7 : i32 to vector<32x128xi32>
    %19 = arith.cmpi ne, %17, %18 : vector<32x128xi32>
    %c0_i32_8 = arith.constant 0 : i32
    %20 = vector.broadcast %c0_i32_8 : i32 to vector<32x128xi32>
    %21 = arith.cmpi slt, %17, %20 : vector<32x128xi32>
    %c0_i32_9 = arith.constant 0 : i32
    %22 = arith.cmpi slt, %15, %c0_i32_9 : i32
    %23 = vector.broadcast %22 : i1 to vector<32x128xi1>
    %24 = vector.broadcast %23 : vector<32x128xi1> to vector<32x128xi1>
    %25 = arith.xori %21, %24 : vector<32x128xi1>
    %26 = arith.andi %25, %19 : vector<32x128xi1>
    %27 = vector.broadcast %15 : i32 to vector<32x128xi32>
    %28 = arith.addi %17, %27 : vector<32x128xi32>
    %29 = arith.select %26, %28, %17 : vector<32x128xi1>, vector<32x128xi32>
    %c0_i32_10 = arith.constant 0 : i32
    %30 = vector.broadcast %c0_i32_10 : i32 to vector<32x128xi32>
    %31 = arith.cmpi eq, %29, %30 : vector<32x128xi32>
    %cst_11 = arith.constant 0.000000e+00 : f32
    %32 = vector.broadcast %cst_11 : f32 to vector<32x128xf32>
    %33 = arith.select %31, %32, %10 : vector<32x128xi1>, vector<32x128xf32>
    %c15_i32 = arith.constant 15 : i32
    %34 = vector.broadcast %c15_i32 : i32 to vector<32x128xi32>
    %35 = arith.cmpi eq, %29, %34 : vector<32x128xi32>
    %cst_12 = arith.constant 0.000000e+00 : f32
    %36 = vector.broadcast %cst_12 : f32 to vector<32x128xf32>
    %37 = arith.select %35, %36, %12 : vector<32x128xi1>, vector<32x128xf32>
    %38 = tpu.concatenate %33, %7, %37 in 1 : vector<32x128xf32>, vector<32x128xf32>, vector<32x128xf32> -> vector<32x384xf32>
    %39 = arith.truncf %38 : vector<32x384xf32> to vector<32x384xbf16>
    %c0_13 = arith.constant 0 : index
    %c0_14 = arith.constant 0 : index
    %40 = vector.load %arg4[%c0_13, %c0_14] : memref<384x128xbf16, #tpu.memory_space<vmem>>, vector<384x128xbf16>
    %cst_15 = arith.constant dense<0.000000e+00> : vector<32x128xf32>
    %41 = tpu.matmul %39, %40, %cst_15 {dimension_numbers = #tpu.dot_dimension_numbers<[1], [0], [0], [1], [0, 0, 1, 1], [], []>} : vector<32x384xbf16>, vector<384x128xbf16>, vector<32x128xf32> -> vector<32x128xf32>
    %c0_16 = arith.constant 0 : index
    %c0_17 = arith.constant 0 : index
    %42 = vector.load %arg5[%c0_16, %c0_17] : memref<1x128xf32, #tpu.memory_space<vmem>>, vector<1x128xf32>
    %43 = vector.broadcast %42 : vector<1x128xf32> to vector<32x128xf32>
    %44 = arith.addf %41, %43 : vector<32x128xf32>
    %c0_18 = arith.constant 0 : index
    %c0_19 = arith.constant 0 : index
    %45 = vector.load %arg6[%c0_18, %c0_19] : memref<32x128xf32, #tpu.memory_space<vmem>>, vector<32x128xf32>
    tpu.vector_store %arg6[%c0_18, %c0_19], %44 {strides = array<i32>} : memref<32x128xf32, #tpu.memory_space<vmem>>, vector<32x128xf32>,
    return
  }
  func.func @transform_0(%arg0: i32) -> (i32, i32) {
    %c0_i32 = arith.constant 0 : i32
    %c0_i32_0 = arith.constant 0 : i32
    return %arg0, %c0_i32 : i32, i32
  }
  func.func @transform_1(%arg0: i32) -> (i32, i32) {
    %c0_i32 = arith.constant 0 : i32
    %c0_i32_0 = arith.constant 0 : i32
    %c0_i32_1 = arith.constant 0 : i32
    return %c0_i32, %c0_i32_0 : i32, i32
  }
  func.func @transform_2(%arg0: i32) -> (i32, i32) {
    %c0_i32 = arith.constant 0 : i32
    %c0_i32_0 = arith.constant 0 : i32
    %c0_i32_1 = arith.constant 0 : i32
    return %c0_i32, %c0_i32_0 : i32, i32
  }
  func.func @transform_3(%arg0: i32) -> (i32, i32) {
    %c0_i32 = arith.constant 0 : i32
    %c0_i32_0 = arith.constant 0 : i32
    %c0_i32_1 = arith.constant 0 : i32
    return %c0_i32, %c0_i32_0 : i32, i32
  }
  func.func @transform_4(%arg0: i32) -> (i32, i32) {
    %c0_i32 = arith.constant 0 : i32
    %c0_i32_0 = arith.constant 0 : i32
    %c0_i32_1 = arith.constant 0 : i32
    return %c0_i32, %c0_i32_0 : i32, i32
  }
  func.func @transform_5(%arg0: i32) -> (i32, i32) {
    %c0_i32 = arith.constant 0 : i32
    %c0_i32_0 = arith.constant 0 : i32
    return %arg0, %c0_i32 : i32, i32
  }
}

</mosaic_0001>

<llo_original>
// kernel: double_conv_pallas.1
$region0: #{double_conv_pallas.1}
  #allocation0 [shape = 'u32[]', space=smem, size = 0x4, offset = 0x4, fixed_abs, tag = 'smem constant byte address 0x4 - core index']
  #allocation1 [shape = 'u32[72,128]{1,0:T(1,128)}', space=vmem, size = 0x9000, scoped, tag = 'internal scratch']
  %s0 = inlined_call_operand.vmem [shape: bf16[32,192], index: 0, kind: input, shape index: {}]
  %s1 = inlined_call_operand.vmem [shape: bf16[192,128], index: 1, kind: input, shape index: {}]
  %s2 = inlined_call_operand.vmem [shape: f32[1,128], index: 2, kind: input, shape index: {}]
  %s3 = inlined_call_operand.vmem [shape: bf16[384,128], index: 3, kind: input, shape index: {}]
  %s4 = inlined_call_operand.vmem [shape: f32[1,128], index: 4, kind: input, shape index: {}]
  %s5 = inlined_call_operand.vmem [shape: f32[32,128], index: 5, kind: output, shape index: {}]
  %s6 = sld [smem:[#allocation0]]
  $region30: #{double_conv_pallas.1} parent=0
    _
  %s8 = ssub.s32 1, %s6
  %s9 = scalar_select 0, %s8, %s6
  // Predicated region
  $region2: #{double_conv_pallas.1} parent=0 // pred_check
    _
  $region3: #{double_conv_pallas.1} parent=0 // pred_check_branch
    %11 = sbr.rel (0) target = $region5
  $region4: #{double_conv_pallas.1} parent=0 // pred_region
    _
  $region5: #{double_conv_pallas.1} parent=0 // pred_fallthru
    _
  // Predicated region
  $region6: #{double_conv_pallas.1} parent=0 // pred_check
    _
  $region7: #{double_conv_pallas.1} parent=0 // pred_check_branch
    %13 = sbr.rel (0) target = $region9
  $region8: #{double_conv_pallas.1} parent=0 // pred_region
    _
  $region9: #{double_conv_pallas.1} parent=0 // pred_fallthru
    _
  // Predicated region
  $region10: #{double_conv_pallas.1} parent=0 // pred_check
    _
  $region11: #{double_conv_pallas.1} parent=0 // pred_check_branch
    %15 = sbr.rel (0) target = $region13
  $region12: #{double_conv_pallas.1} parent=0 // pred_region
    _
  $region13: #{double_conv_pallas.1} parent=0 // pred_fallthru
    _
  // Predicated region
  $region14: #{double_conv_pallas.1} parent=0 // pred_check
    _
  $region15: #{double_conv_pallas.1} parent=0 // pred_check_branch
    %17 = sbr.rel (0) target = $region17
  $region16: #{double_conv_pallas.1} parent=0 // pred_region
    _
  $region17: #{double_conv_pallas.1} parent=0 // pred_fallthru
    _
  // Predicated region
  $region18: #{double_conv_pallas.1} parent=0 // pred_check
    _
  $region19: #{double_conv_pallas.1} parent=0 // pred_check_branch
    %19 = sbr.rel (0) target = $region21
  $region20: #{double_conv_pallas.1} parent=0 // pred_region
    _
  $region21: #{double_conv_pallas.1} parent=0 // pred_fallthru
    _
  %v21 = vld [vmem:[%s0] sm:$0xff]
  %v22 = vld [vmem:[%s0 + $0x8] sm:$0xff]
  %v23 = vld [vmem:[%s0 + $0x10] sm:$0xff]
  %v24 = vld [vmem:[%s0 + $0x18] sm:$0xff]
  %v25 = vld [vmem:[%s1] sm:$0xf]
  %v26 = vld [vmem:[%s1 + $0x4] sm:$0xf]
  %v27 = vld [vmem:[%s1 + $0x8] sm:$0xf]
  %v28 = vld [vmem:[%s1 + $0xc] sm:$0xf]
  %v29 = vld [vmem:[%s1 + $0x10] sm:$0xf]
  %v30 = vld [vmem:[%s1 + $0x14] sm:$0xf]
  %v31 = vld [vmem:[%s1 + $0x18] sm:$0xf]
  %v32 = vld [vmem:[%s1 + $0x1c] sm:$0xf]
  %v33 = vld [vmem:[%s1 + $0x20] sm:$0xf]
  %v34 = vld [vmem:[%s1 + $0x24] sm:$0xf]
  %v35 = vld [vmem:[%s1 + $0x28] sm:$0xf]
  %v36 = vld [vmem:[%s1 + $0x2c] sm:$0xf]
  %v37 = vld [vmem:[%s1 + $0x30] sm:$0xf]
  %v38 = vld [vmem:[%s1 + $0x34] sm:$0xf]
  %v39 = vld [vmem:[%s1 + $0x38] sm:$0xf]
  %v40 = vld [vmem:[%s1 + $0x3c] sm:$0xf]
  %v41 = vld [vmem:[%s1 + $0x40] sm:$0xf]
  %v42 = vld [vmem:[%s1 + $0x44] sm:$0xf]
  %v43 = vld [vmem:[%s1 + $0x48] sm:$0xf]
  %v44 = vld [vmem:[%s1 + $0x4c] sm:$0xf]
  %v45 = vld [vmem:[%s1 + $0x50] sm:$0xf]
  %v46 = vld [vmem:[%s1 + $0x54] sm:$0xf]
  %v47 = vld [vmem:[%s1 + $0x58] sm:$0xf]
  %v48 = vld [vmem:[%s1 + $0x5c] sm:$0xf]
  %v49 = vld [vmem:[%s2] sm:$0x1]
  %v51 = vperm.slane %v49, 0
  %v57 = vunpack.c.l.b16 %v21
  %v58 = vunpack.c.h.b16 %v21
  %v59 = vunpack.c.l.b16 %v22
  %v60 = vunpack.c.h.b16 %v22
  %v61 = vunpack.c.l.b16 %v23
  %v62 = vunpack.c.h.b16 %v23
  %v63 = vunpack.c.l.b16 %v24
  %v64 = vunpack.c.h.b16 %v24
  %v65 = vpack.c.b16 %v59, %v57
  %v66 = vpack.c.b16 %v60, %v58
  %v67 = vpack.c.b16 %v63, %v61
  %v68 = vpack.c.b16 %v64, %v62
  %v95 = vunpack.c.l.b16 %v25
  %v96 = vunpack.c.l.b16 %v26
  %v97 = vunpack.c.l.b16 %v27
  %v98 = vunpack.c.l.b16 %v28
  %v99 = vunpack.c.l.b16 %v29
  %v100 = vunpack.c.l.b16 %v30
  %v101 = vunpack.c.l.b16 %v31
  %v102 = vunpack.c.l.b16 %v32
  %v103 = vunpack.c.l.b16 %v33
  %v104 = vunpack.c.l.b16 %v34
  %v105 = vunpack.c.l.b16 %v35
  %v106 = vunpack.c.l.b16 %v36
  %v107 = vunpack.c.l.b16 %v37
  %v108 = vunpack.c.l.b16 %v38
  %v109 = vunpack.c.l.b16 %v39
  %v110 = vunpack.c.l.b16 %v40
  %v111 = vunpack.c.l.b16 %v41
  %v112 = vunpack.c.l.b16 %v42
  %v113 = vunpack.c.l.b16 %v43
  %v114 = vunpack.c.l.b16 %v44
  %v115 = vunpack.c.l.b16 %v45
  %v116 = vunpack.c.l.b16 %v46
  %v117 = vunpack.c.l.b16 %v47
  %v118 = vunpack.c.l.b16 %v48
  %v119 = vpack.c.b16 %v96, %v95
  %v120 = vpack.c.b16 %v98, %v97
  %v121 = vpack.c.b16 %v100, %v99
  %v122 = vpack.c.b16 %v102, %v101
  %v123 = vpack.c.b16 %v104, %v103
  %v124 = vpack.c.b16 %v106, %v105
  %v125 = vpack.c.b16 %v108, %v107
  %v126 = vpack.c.b16 %v110, %v109
  %v127 = vpack.c.b16 %v112, %v111
  %v128 = vpack.c.b16 %v114, %v113
  %v129 = vpack.c.b16 %v116, %v115
  %v130 = vpack.c.b16 %v118, %v117
  %vm143 = vcmask 523264
  %v145 = vsel %vm143, %v66, 0
  %v148 = vsel %vm143, %v68, 0
  %150 = vmatpush.bf16.msra.mxu0 %v126
  %151 = vmatpush.bf16.msra.mxu0 %v125
  %152 = vmatpush.bf16.msra.mxu0 %v124
  %153 = vmatpush.bf16.msra.mxu0 %v123
  %154 = vmatpush.bf16.msra.mxu0 %v122
  %155 = vmatpush.bf16.msra.mxu0 %v121
  %156 = vmatpush.bf16.msra.mxu0 %v120
  %157 = vmatpush.bf16.msra.mxu0 %v119
  %158 = vmatmul.bf16.gmra.mxu0 %v65
  %v159 = vpop.f32.mrf.mxu0
  %v160 = vadd.f32 %v51, %v159
  %v161 = vpop.f32.mrf.mxu0
  %v162 = vadd.f32 %v51, %v161
  %163 = vmatmul.bf16.gmra.mxu0 %v67
  %v164 = vpop.f32.mrf.mxu0
  %v165 = vadd.f32 %v51, %v164
  %v166 = vpop.f32.mrf.mxu0
  %v167 = vadd.f32 %v51, %v166
  %168 = vdwg.mxu0
  %169 = vmatpush.bf16.msra.mxu0 0
  %170 = vmatpush.bf16.msra.mxu0 0
  %171 = vmatpush.bf16.msra.mxu0 0
  %172 = vmatpush.bf16.msra.mxu0 0
  %173 = vmatpush.bf16.msra.mxu0 %v130
  %174 = vmatpush.bf16.msra.mxu0 %v129
  %175 = vmatpush.bf16.msra.mxu0 %v128
  %176 = vmatpush.bf16.msra.mxu0 %v127
  %177 = vmatmul.bf16.gmra.mxu0 %v145
  %v178 = vpop.f32.mrf.mxu0
  %v179 = vadd.f32 %v160, %v178
  %v180 = vpop.f32.mrf.mxu0
  %v181 = vadd.f32 %v162, %v180
  %182 = vmatmul.bf16.gmra.mxu0 %v148
  %v183 = vpop.f32.mrf.mxu0
  %v184 = vadd.f32 %v165, %v183
  %v185 = vpop.f32.mrf.mxu0
  %v186 = vadd.f32 %v167, %v185
  %187 = vdwg.mxu0
  %v188 = vmax.f32 %v179, 0.0
  %v189 = vmax.f32 %v181, 0.0
  %v190 = vmax.f32 %v184, 0.0
  %v191 = vmax.f32 %v186, 0.0
  %vm196 = vcmask 1040384
  %v197 = vrot.slane %v188, 7
  %v198 = vrot.slane %v189, 7
  %v199 = vsel %vm196, %v197, %v198
  %v200 = vrot.slane %v190, 7
  %v201 = vsel %vm196, %v198, %v200
  %v202 = vrot.slane %v191, 7
  %v203 = vsel %vm196, %v200, %v202
  %v208 = vsel %vm196, 0.0, %v197
  %vm209 = vcmask 1046528
  %v210 = vrot.slane %v188, 1
  %v211 = vrot.slane %v189, 1
  %v212 = vsel %vm209, %v210, %v211
  %v213 = vrot.slane %v190, 1
  %v214 = vsel %vm209, %v211, %v213
  %v215 = vrot.slane %v191, 1
  %v216 = vsel %vm209, %v213, %v215
  %v221 = vsel %vm209, %v215, 0.0
  %v222 = vlaneseq
  %v223 = vshrl.u32 %v222, 7
  %v224 = vadd.s32 %v223, 8
  %v225 = vadd.s32 %v223, 16
  %v226 = vadd.s32 %v223, 24
  %vm227 = vcmp.lt.s32.totalorder %v223, 0
  %v228 = vsub.s32 0, %v223
  %v229 = vsel %vm227, %v228, %v223
  %v230 = vshrl.u32 %v229, 4
  %v231 = vand.u32 %v229, 15
  %v232 = vsub.s32 0, %v231
  %v233 = vsel %vm227, %v232, %v231
  %vm234 = vcmp.lt.s32.totalorder %v224, 0
  %v235 = vsub.s32 0, %v224
  %v236 = vsel %vm234, %v235, %v224
  %v237 = vshrl.u32 %v236, 4
  %v238 = vand.u32 %v236, 15
  %v239 = vsub.s32 0, %v238
  %v240 = vsel %vm234, %v239, %v238
  %vm241 = vcmp.lt.s32.totalorder %v225, 0
  %v242 = vsub.s32 0, %v225
  %v243 = vsel %vm241, %v242, %v225
  %v244 = vshrl.u32 %v243, 4
  %v245 = vand.u32 %v243, 15
  %v246 = vsub.s32 0, %v245
  %v247 = vsel %vm241, %v246, %v245
  %vm248 = vcmp.lt.s32.totalorder %v226, 0
  %v249 = vsub.s32 0, %v226
  %v250 = vsel %vm248, %v249, %v226
  %v251 = vshrl.u32 %v250, 4
  %v252 = vand.u32 %v250, 15
  %v253 = vsub.s32 0, %v252
  %v254 = vsel %vm248, %v253, %v252
  %vm255 = vcmp.ne.s32.totalorder %v233, 0
  %vm256 = vcmp.ne.s32.totalorder %v240, 0
  %vm257 = vcmp.ne.s32.totalorder %v247, 0
  %vm258 = vcmp.ne.s32.totalorder %v254, 0
  %vm259 = vcmp.lt.s32.totalorder %v233, 0
  %vm260 = vcmp.lt.s32.totalorder %v240, 0
  %vm261 = vcmp.lt.s32.totalorder %v247, 0
  %vm262 = vcmp.lt.s32.totalorder %v254, 0
  %vm263 = vmand %vm259, %vm255
  %vm264 = vmand %vm260, %vm256
  %vm265 = vmand %vm261, %vm257
  %vm266 = vmand %vm262, %vm258
  %v267 = vadd.s32 %v233, 16
  %v268 = vadd.s32 %v240, 16
  %v269 = vadd.s32 %v247, 16
  %v270 = vadd.s32 %v254, 16
  %v271 = vsel %vm263, %v267, %v233
  %v272 = vsel %vm264, %v268, %v240
  %v273 = vsel %vm265, %v269, %v247
  %v274 = vsel %vm266, %v270, %v254
  %vm275 = vcmp.eq.s32.totalorder %v271, 0
  %vm276 = vcmp.eq.s32.totalorder %v272, 0
  %vm277 = vcmp.eq.s32.totalorder %v273, 0
  %vm278 = vcmp.eq.s32.totalorder %v274, 0
  %v279 = vsel %vm275, 0.0, %v208
  %v280 = vsel %vm276, 0.0, %v199
  %v281 = vsel %vm277, 0.0, %v201
  %v282 = vsel %vm278, 0.0, %v203
  %vm283 = vcmp.eq.s32.totalorder %v271, 15
  %vm284 = vcmp.eq.s32.totalorder %v272, 15
  %vm285 = vcmp.eq.s32.totalorder %v273, 15
  %vm286 = vcmp.eq.s32.totalorder %v274, 15
  %v287 = vsel %vm283, 0.0, %v212
  %v288 = vsel %vm284, 0.0, %v214
  %v289 = vsel %vm285, 0.0, %v216
  %v290 = vsel %vm286, 0.0, %v221
  %v291 = vpack.c.bf16 %v280, %v279
  %v292 = vpack.c.bf16 %v189, %v188
  %v293 = vpack.c.bf16 %v288, %v287
  %v294 = vpack.c.bf16 %v282, %v281
  %v295 = vpack.c.bf16 %v191, %v190
  %v296 = vpack.c.bf16 %v290, %v289
  %v297 = vld [vmem:[%s3] sm:$0xf]
  %v298 = vld [vmem:[%s3 + $0x4] sm:$0xf]
  %v299 = vld [vmem:[%s3 + $0x8] sm:$0xf]
  %v300 = vld [vmem:[%s3 + $0xc] sm:$0xf]
  %v301 = vld [vmem:[%s3 + $0x10] sm:$0xf]
  %v302 = vld [vmem:[%s3 + $0x14] sm:$0xf]
  %v303 = vld [vmem:[%s3 + $0x18] sm:$0xf]
  %v304 = vld [vmem:[%s3 + $0x1c] sm:$0xf]
  %v305 = vld [vmem:[%s3 + $0x20] sm:$0xf]
  %v306 = vld [vmem:[%s3 + $0x24] sm:$0xf]
  %v307 = vld [vmem:[%s3 + $0x28] sm:$0xf]
  %v308 = vld [vmem:[%s3 + $0x2c] sm:$0xf]
  %v309 = vld [vmem:[%s3 + $0x30] sm:$0xf]
  %v310 = vld [vmem:[%s3 + $0x34] sm:$0xf]
  %v311 = vld [vmem:[%s3 + $0x38] sm:$0xf]
  %v312 = vld [vmem:[%s3 + $0x3c] sm:$0xf]
  %v313 = vld [vmem:[%s3 + $0x40] sm:$0xf]
  %v314 = vld [vmem:[%s3 + $0x44] sm:$0xf]
  %v315 = vld [vmem:[%s3 + $0x48] sm:$0xf]
  %v316 = vld [vmem:[%s3 + $0x4c] sm:$0xf]
  %v317 = vld [vmem:[%s3 + $0x50] sm:$0xf]
  %v318 = vld [vmem:[%s3 + $0x54] sm:$0xf]
  %v319 = vld [vmem:[%s3 + $0x58] sm:$0xf]
  %v320 = vld [vmem:[%s3 + $0x5c] sm:$0xf]
  %v321 = vld [vmem:[%s3 + $0x60] sm:$0xf]
  %v322 = vld [vmem:[%s3 + $0x64] sm:$0xf]
  %v323 = vld [vmem:[%s3 + $0x68] sm:$0xf]
  %v324 = vld [vmem:[%s3 + $0x6c] sm:$0xf]
  %v325 = vld [vmem:[%s3 + $0x70] sm:$0xf]
  %v326 = vld [vmem:[%s3 + $0x74] sm:$0xf]
  %v327 = vld [vmem:[%s3 + $0x78] sm:$0xf]
  %v328 = vld [vmem:[%s3 + $0x7c] sm:$0xf]
  %v329 = vld [vmem:[%s3 + $0x80] sm:$0xf]
  %v330 = vld [vmem:[%s3 + $0x84] sm:$0xf]
  %v331 = vld [vmem:[%s3 + $0x88] sm:$0xf]
  %v332 = vld [vmem:[%s3 + $0x8c] sm:$0xf]
  %v333 = vld [vmem:[%s3 + $0x90] sm:$0xf]
  %v334 = vld [vmem:[%s3 + $0x94] sm:$0xf]
  %v335 = vld [vmem:[%s3 + $0x98] sm:$0xf]
  %v336 = vld [vmem:[%s3 + $0x9c] sm:$0xf]
  %v337 = vld [vmem:[%s3 + $0xa0] sm:$0xf]
  %v338 = vld [vmem:[%s3 + $0xa4] sm:$0xf]
  %v339 = vld [vmem:[%s3 + $0xa8] sm:$0xf]
  %v340 = vld [vmem:[%s3 + $0xac] sm:$0xf]
  %v341 = vld [vmem:[%s3 + $0xb0] sm:$0xf]
  %v342 = vld [vmem:[%s3 + $0xb4] sm:$0xf]
  %v343 = vld [vmem:[%s3 + $0xb8] sm:$0xf]
  %v344 = vld [vmem:[%s3 + $0xbc] sm:$0xf]
  %v345 = vld [vmem:[%s4] sm:$0x1]
  %v347 = vperm.slane %v345, 0
  %v397 = vunpack.c.l.b16 %v297
  %v398 = vunpack.c.l.b16 %v298
  %v399 = vunpack.c.l.b16 %v299
  %v400 = vunpack.c.l.b16 %v300
  %v401 = vunpack.c.l.b16 %v301
  %v402 = vunpack.c.l.b16 %v302
  %v403 = vunpack.c.l.b16 %v303
  %v404 = vunpack.c.l.b16 %v304
  %v405 = vunpack.c.l.b16 %v305
  %v406 = vunpack.c.l.b16 %v306
  %v407 = vunpack.c.l.b16 %v307
  %v408 = vunpack.c.l.b16 %v308
  %v409 = vunpack.c.l.b16 %v309
  %v410 = vunpack.c.l.b16 %v310
  %v411 = vunpack.c.l.b16 %v311
  %v412 = vunpack.c.l.b16 %v312
  %v413 = vunpack.c.l.b16 %v313
  %v414 = vunpack.c.l.b16 %v314
  %v415 = vunpack.c.l.b16 %v315
  %v416 = vunpack.c.l.b16 %v316
  %v417 = vunpack.c.l.b16 %v317
  %v418 = vunpack.c.l.b16 %v318
  %v419 = vunpack.c.l.b16 %v319
  %v420 = vunpack.c.l.b16 %v320
  %v421 = vunpack.c.l.b16 %v321
  %v422 = vunpack.c.l.b16 %v322
  %v423 = vunpack.c.l.b16 %v323
  %v424 = vunpack.c.l.b16 %v324
  %v425 = vunpack.c.l.b16 %v325
  %v426 = vunpack.c.l.b16 %v326
  %v427 = vunpack.c.l.b16 %v327
  %v428 = vunpack.c.l.b16 %v328
  %v429 = vunpack.c.l.b16 %v329
  %v430 = vunpack.c.l.b16 %v330
  %v431 = vunpack.c.l.b16 %v331
  %v432 = vunpack.c.l.b16 %v332
  %v433 = vunpack.c.l.b16 %v333
  %v434 = vunpack.c.l.b16 %v334
  %v435 = vunpack.c.l.b16 %v335
  %v436 = vunpack.c.l.b16 %v336
  %v437 = vunpack.c.l.b16 %v337
  %v438 = vunpack.c.l.b16 %v338
  %v439 = vunpack.c.l.b16 %v339
  %v440 = vunpack.c.l.b16 %v340
  %v441 = vunpack.c.l.b16 %v341
  %v442 = vunpack.c.l.b16 %v342
  %v443 = vunpack.c.l.b16 %v343
  %v444 = vunpack.c.l.b16 %v344
  %v445 = vpack.c.b16 %v398, %v397
  %v446 = vpack.c.b16 %v400, %v399
  %v447 = vpack.c.b16 %v402, %v401
  %v448 = vpack.c.b16 %v404, %v403
  %v449 = vpack.c.b16 %v406, %v405
  %v450 = vpack.c.b16 %v408, %v407
  %v451 = vpack.c.b16 %v410, %v409
  %v452 = vpack.c.b16 %v412, %v411
  %v453 = vpack.c.b16 %v414, %v413
  %v454 = vpack.c.b16 %v416, %v415
  %v455 = vpack.c.b16 %v418, %v417
  %v456 = vpack.c.b16 %v420, %v419
  %v457 = vpack.c.b16 %v422, %v421
  %v458 = vpack.c.b16 %v424, %v423
  %v459 = vpack.c.b16 %v426, %v425
  %v460 = vpack.c.b16 %v428, %v427
  %v461 = vpack.c.b16 %v430, %v429
  %v462 = vpack.c.b16 %v432, %v431
  %v463 = vpack.c.b16 %v434, %v433
  %v464 = vpack.c.b16 %v436, %v435
  %v465 = vpack.c.b16 %v438, %v437
  %v466 = vpack.c.b16 %v440, %v439
  %v467 = vpack.c.b16 %v442, %v441
  %v468 = vpack.c.b16 %v444, %v443
  %493 = vmatpush.bf16.msra.mxu0 %v452
  %494 = vmatpush.bf16.msra.mxu0 %v451
  %495 = vmatpush.bf16.msra.mxu0 %v450
  %496 = vmatpush.bf16.msra.mxu0 %v449
  %497 = vmatpush.bf16.msra.mxu0 %v448
  %498 = vmatpush.bf16.msra.mxu0 %v447
  %499 = vmatpush.bf16.msra.mxu0 %v446
  %500 = vmatpush.bf16.msra.mxu0 %v445
  %501 = vmatmul.bf16.gmra.mxu0 %v291
  %v502 = vpop.f32.mrf.mxu0
  %v503 = vadd.f32 %v347, %v502
  %v504 = vpop.f32.mrf.mxu0
  %v505 = vadd.f32 %v347, %v504
  %506 = vmatmul.bf16.gmra.mxu0 %v294
  %v507 = vpop.f32.mrf.mxu0
  %v508 = vadd.f32 %v347, %v507
  %v509 = vpop.f32.mrf.mxu0
  %v510 = vadd.f32 %v347, %v509
  %511 = vdwg.mxu0
  %512 = vmatpush.bf16.msra.mxu0 %v460
  %513 = vmatpush.bf16.msra.mxu0 %v459
  %514 = vmatpush.bf16.msra.mxu0 %v458
  %515 = vmatpush.bf16.msra.mxu0 %v457
  %516 = vmatpush.bf16.msra.mxu0 %v456
  %517 = vmatpush.bf16.msra.mxu0 %v455
  %518 = vmatpush.bf16.msra.mxu0 %v454
  %519 = vmatpush.bf16.msra.mxu0 %v453
  %520 = vmatmul.bf16.gmra.mxu0 %v292
  %v521 = vpop.f32.mrf.mxu0
  %v522 = vadd.f32 %v503, %v521
  %v523 = vpop.f32.mrf.mxu0
  %v524 = vadd.f32 %v505, %v523
  %525 = vmatmul.bf16.gmra.mxu0 %v295
  %v526 = vpop.f32.mrf.mxu0
  %v527 = vadd.f32 %v508, %v526
  %v528 = vpop.f32.mrf.mxu0
  %v529 = vadd.f32 %v510, %v528
  %530 = vdwg.mxu0
  %531 = vmatpush.bf16.msra.mxu0 %v468
  %532 = vmatpush.bf16.msra.mxu0 %v467
  %533 = vmatpush.bf16.msra.mxu0 %v466
  %534 = vmatpush.bf16.msra.mxu0 %v465
  %535 = vmatpush.bf16.msra.mxu0 %v464
  %536 = vmatpush.bf16.msra.mxu0 %v463
  %537 = vmatpush.bf16.msra.mxu0 %v462
  %538 = vmatpush.bf16.msra.mxu0 %v461
  %539 = vmatmul.bf16.gmra.mxu0 %v293
  %v540 = vpop.f32.mrf.mxu0
  %v541 = vadd.f32 %v522, %v540
  %v542 = vpop.f32.mrf.mxu0
  %v543 = vadd.f32 %v524, %v542
  %544 = vmatmul.bf16.gmra.mxu0 %v296
  %v545 = vpop.f32.mrf.mxu0
  %v546 = vadd.f32 %v527, %v545
  %v547 = vpop.f32.mrf.mxu0
  %v548 = vadd.f32 %v529, %v547
  %549 = vdwg.mxu0
  %550 = vst [vmem:[%s5] sm:$0xff] %v541
  %551 = vst [vmem:[%s5 + $0x8] sm:$0xff] %v543
  %552 = vst [vmem:[%s5 + $0x10] sm:$0xff] %v546
  %553 = vst [vmem:[%s5 + $0x18] sm:$0xff] %v548
  // Predicated region
  $region22: #{double_conv_pallas.1} parent=0 // pred_check
    _
  $region23: #{double_conv_pallas.1} parent=0 // pred_check_branch
    %555 = sbr.rel (0) target = $region25
  $region24: #{double_conv_pallas.1} parent=0 // pred_region
    _
  $region25: #{double_conv_pallas.1} parent=0 // pred_fallthru
    _
  // Predicated region
  $region26: #{double_conv_pallas.1} parent=0 // pred_check
    _
  $region27: #{double_conv_pallas.1} parent=0 // pred_check_branch
    %557 = sbr.rel (0) target = $region29
  $region28: #{double_conv_pallas.1} parent=0 // pred_region
    _
  $region29: #{double_conv_pallas.1} parent=0 // pred_fallthru
    _

</llo_original>
